<compile_context>
chip_gen: v5e
topology: v5e:2x2
jax: 0.10.0
libtpu: 0.0.40
codegen_flags: <defaults>
</compile_context>

<pallas_src>
import functools
import math

import jax
import jax.numpy as jnp
from jax.experimental import pallas as pl
from jax.experimental.pallas import tpu as pltpu


# --------------------------------------------------------------------------- #
# Kernel
# --------------------------------------------------------------------------- #
def _pos_enc_kernel(x_ref, pe_ref, o_ref, *, scale):
    # Compute in f32 regardless of the activation dtype (matches the f32 torch
    # reference; the extra casts ride on free VALU slack), then cast back.
    x = x_ref[...].astype(jnp.float32)          # (bt, t_rows, lanes)
    p = pe_ref[...].astype(jnp.float32)         # (1,  t_rows, lanes) -> broadcasts over batch
    o_ref[...] = (x * scale + p).astype(o_ref.dtype)


# --------------------------------------------------------------------------- #
# Buffer construction (identical to the torch __init__)
# --------------------------------------------------------------------------- #
def make_positional_encoding(max_len: int, d_model: int, dtype=jnp.float32) -> jnp.ndarray:
    """Build pe once at module init; `dtype` should match the activation dtype
    so no per-call cast is needed (pass f32 for exact reference numerics)."""
    position = jnp.arange(max_len, dtype=jnp.float32)[:, None]             # (max_len, 1)
    angular_speed = jnp.exp(
        jnp.arange(0, d_model, 2, dtype=jnp.float32)
        * (-math.log(10000.0) / d_model)
    )                                                                      # (d_model//2,)
    pe = jnp.zeros((max_len, d_model), dtype=jnp.float32)
    pe = pe.at[:, 0::2].set(jnp.sin(position * angular_speed))
    pe = pe.at[:, 1::2].set(jnp.cos(position * angular_speed))
    return pe[None, :, :].astype(dtype)                                    # (1, max_len, d_model)


# --------------------------------------------------------------------------- #
# Tiling helpers
# --------------------------------------------------------------------------- #
def _round_up(x: int, m: int) -> int:
    return ((x + m - 1) // m) * m


def _choose_row_tile(rows: int, max_rows: int, sublane: int,
                     *, prefer_tiles: int = 4, min_tile_rows: int = 512) -> int:
    """Row tile that (a) fits max_rows, (b) is a sublane multiple or the full
    dim, (c) splits `rows` evenly (no runt last block), and (d) exposes at
    least 2-4 tiles of >= min_tile_rows rows when the slab is big enough so
    v7x megacore has balanced steps on both TensorCores."""
    if rows <= max_rows and rows < 2 * min_tile_rows:
        return rows                                    # single full-dim block
    cap = max(sublane, (max_rows // sublane) * sublane)
    if rows >= 2 * min_tile_rows:
        want = min(prefer_tiles, max(2, rows // min_tile_rows))
        cap = min(cap, max(min_tile_rows, _round_up(-(-rows // want), sublane)))
    cap = max(sublane, min(cap, rows))
    n_tiles = -(-rows // cap)
    return min(rows, _round_up(-(-rows // n_tiles), sublane))


# --------------------------------------------------------------------------- #
# Forward
# --------------------------------------------------------------------------- #
def positional_encoding_forward(
    x: jnp.ndarray,
    pe: jnp.ndarray,
    d_model: int,
    *,
    vmem_budget_bytes: int = 16 * 1024 * 1024,
    donate_x: bool = False,   # only set True if x is actually donated at the jit
                              # boundary (jax.jit donate_argnums); otherwise XLA
                              # inserts a defensive copy and the alias costs a pass.
) -> jnp.ndarray:
    B, S, D = x.shape
    assert D == d_model
    _, max_len, pe_d = pe.shape
    assert pe_d == D and S <= max_len
    scale = float(math.sqrt(d_model))

    itemsize = jnp.dtype(x.dtype).itemsize
    sublane = max(8, 32 // itemsize)                            # 8 f32 / 16 bf16 / 32 i8
    pe_sublane = max(8, 32 // jnp.dtype(pe.dtype).itemsize)

    # ---- lane-dense 2-D view (rows, lanes) of the per-batch (S, D) slab ------
    pad_lanes = 0
    pe_full = None          # full pe buffer reinterpreted to (1, pe_rows_full, lanes)
    pe_rows_full = 0
    if D % 128 == 0:
        rows, lanes = S, D
        xk = x
        pe_full, pe_rows_full = pe, max_len
    elif (S * D) % 128 == 0:
        rows, lanes = (S * D) // 128, 128                       # exact relayout (elementwise)
        xk = x.reshape(B, rows, lanes)
        if (max_len * D) % 128 == 0:
            pe_rows_full = (max_len * D) // 128
            pe_full = pe.reshape(1, pe_rows_full, 128)
    else:
        # Fallback: lane-pad to the next multiple of 128 so stores stay
        # unmasked (costs one extra pad/slice pass, still cheaper than vst.msk).
        lanes = _round_up(D, 128)
        pad_lanes = lanes - D
        rows = S
        xk = jnp.pad(x, ((0, 0), (0, 0), (0, pad_lanes)))

    # ---- row tile: 3 refs x 2 pipeline buffers inside the VMEM budget --------
    max_rows = max(sublane, vmem_budget_bytes // (6 * lanes * itemsize))
    t_rows = _choose_row_tile(rows, max_rows, sublane)
    n_row_tiles = pl.cdiv(rows, t_rows)

    # ---- pe operand: full buffer (no per-call slice) when the BlockSpec is
    # legal for it; otherwise slice once (tiny shapes / odd lane layouts) ------
    if pe_full is not None and (t_rows % pe_sublane == 0 or t_rows == pe_rows_full):
        pek = pe_full
    else:
        pe_s = pe[:, :S, :]
        if pad_lanes:
            pe_s = jnp.pad(pe_s, ((0, 0), (0, 0), (0, pad_lanes)))
        pek = pe_s.reshape(1, rows, lanes)

    # ---- batch folding: for small slabs (single row tile) pack several
    # batches per block so each DMA stays well past the bandwidth knee ---------
    bt = 1
    if n_row_tiles == 1 and B > 1:
        tile_bytes = t_rows * lanes * itemsize
        bt = max(1, (vmem_budget_bytes // (2 * max(tile_bytes, 1)) - 1) // 2)
        bt = min(bt, B)
        bt = pl.cdiv(B, pl.cdiv(B, bt))                         # even batch split
    n_batch_tiles = pl.cdiv(B, bt)

    grid = (n_row_tiles, n_batch_tiles)                         # rows outer, batch inner
    kernel = functools.partial(_pos_enc_kernel, scale=scale)

    out = pl.pallas_call(
        kernel,
        out_shape=jax.ShapeDtypeStruct((B, rows, lanes), x.dtype),
        grid=grid,
        in_specs=[
            pl.BlockSpec((bt, t_rows, lanes), lambda r, b: (b, r, 0)),   # x tile
            pl.BlockSpec((1, t_rows, lanes), lambda r, b: (0, r, 0)),    # pe tile, reused over b
        ],
        out_specs=pl.BlockSpec((bt, t_rows, lanes), lambda r, b: (b, r, 0)),
        compiler_params=pltpu.CompilerParams(
            # batch axis sequential so the pe-DMA-skip is guaranteed; row axis
            # parallel so v7x megacore can shard the steps.
            dimension_semantics=("parallel", "arbitrary"),
            vmem_limit_bytes=32 * 1024 * 1024,
        ),
        cost_estimate=pl.CostEstimate(
            flops=2 * B * S * D,
            transcendentals=0,
            bytes_accessed=2 * B * S * D * itemsize + S * D * jnp.dtype(pe.dtype).itemsize,
        ),
        input_output_aliases=({0: 0} if donate_x else {}),
    )(xk, pek)

    if pad_lanes:
        return out[:, :, :D]
    return out.reshape(B, S, D)


# --------------------------------------------------------------------------- #
# Demo / correctness checks
# --------------------------------------------------------------------------- #
if __name__ == "__main__":
    # --- small shapes matching the module: exercises the (S*D)%128==0 relayout
    max_len, d_model, batch, seq = 16, 32, 2, 8
    key = jax.random.PRNGKey(0)
    x = jax.random.normal(key, (batch, seq, d_model), dtype=jnp.float32)
    pe = make_positional_encoding(max_len, d_model)

    out = positional_encoding_forward(x, pe, d_model)
    jax.block_until_ready(out)
    ref = x * math.sqrt(d_model) + pe[:, :seq, :]
    assert out.shape == (batch, seq, d_model)
    assert jnp.allclose(out, ref, atol=1e-6, rtol=1e-6)

    # --- lane-aligned (D % 128 == 0) path with max_len > S: full pe buffer,
    #     no per-call slice/cast ----------------------------------------------
    ml2, d2, s2 = 64, 128, 16
    x2 = jax.random.normal(jax.random.PRNGKey(0), (batch, s2, d2), dtype=jnp.float32)
    pe2 = make_positional_encoding(ml2, d2)
    out2 = positional_encoding_forward(x2, pe2, d2)
    jax.block_until_ready(out2)
    ref2 = x2 * math.sqrt(d2) + pe2[:, :s2, :]
    assert jnp.allclose(out2, ref2, atol=1e-6, rtol=1e-6)

    # --- awkward-D fallback (lane padding keeps stores unmasked) --------------
    d3, s3 = 20, 7
    x3 = jax.random.normal(jax.random.PRNGKey(0), (batch, s3, d3), dtype=jnp.float32)
    pe3 = make_positional_encoding(16, d3)
    out3 = positional_encoding_forward(x3, pe3, d3)
    jax.block_until_ready(out3)
    ref3 = x3 * math.sqrt(d3) + pe3[:, :s3, :]
    assert jnp.allclose(out3, ref3, atol=1e-6, rtol=1e-6)

    # --- bf16 activations: kernel computes in f32 internally ------------------
    x4 = jax.random.normal(jax.random.PRNGKey(0), (batch, s2, d2), dtype=jnp.bfloat16)
    out4 = positional_encoding_forward(x4, pe2, d2)
    jax.block_until_ready(out4)
    ref4 = (x4.astype(jnp.float32) * math.sqrt(d2) + pe2[:, :s2, :]).astype(jnp.bfloat16)
    assert jnp.allclose(out4.astype(jnp.float32), ref4.astype(jnp.float32),
                        atol=1e-2, rtol=1e-2)

    print("KERNEL_OK")
</pallas_src>

<mosaic_0001>
module attributes {stable_mosaic.version = 11 : i64} {
  func.func @_pos_enc_kernel(%arg0: i32, %arg1: i32, %arg2: memref<2x2x128xf32, #tpu.memory_space<vmem>>, %arg3: memref<1x2x128xf32, #tpu.memory_space<vmem>>, %arg4: memref<2x2x128xf32, #tpu.memory_space<vmem>>) attributes {dimension_semantics = [#tpu.dimension_semantics<parallel>, #tpu.dimension_semantics<arbitrary>], iteration_bounds = array<i64: 1, 1>, scalar_prefetch = 0 : i64, scratch_operands = 0 : i64, tpu.core_type = #tpu.core_type<tc>, window_params = [{transform_indices = @transform_0, window_bounds = array<i64: 2, 2, 128>}, {transform_indices = @transform_1, window_bounds = array<i64: 1, 2, 128>}, {transform_indices = @transform_2, window_bounds = array<i64: 2, 2, 128>}]} {
    %c0 = arith.constant 0 : index
    %c0_0 = arith.constant 0 : index
    %c0_1 = arith.constant 0 : index
    %0 = vector.load %arg2[%c0, %c0_0, %c0_1] : memref<2x2x128xf32, #tpu.memory_space<vmem>>, vector<2x2x128xf32>
    %c0_2 = arith.constant 0 : index
    %c0_3 = arith.constant 0 : index
    %c0_4 = arith.constant 0 : index
    %1 = vector.load %arg3[%c0_2, %c0_3, %c0_4] : memref<1x2x128xf32, #tpu.memory_space<vmem>>, vector<1x2x128xf32>
    %cst = arith.constant 5.65685415 : f32
    %2 = vector.broadcast %cst : f32 to vector<2x2x128xf32>
    %3 = arith.mulf %0, %2 : vector<2x2x128xf32>
    %4 = vector.broadcast %1 : vector<1x2x128xf32> to vector<2x2x128xf32>
    %5 = arith.addf %3, %4 : vector<2x2x128xf32>
    %c0_5 = arith.constant 0 : index
    %c0_6 = arith.constant 0 : index
    %c0_7 = arith.constant 0 : index
    %6 = vector.load %arg4[%c0_5, %c0_6, %c0_7] : memref<2x2x128xf32, #tpu.memory_space<vmem>>, vector<2x2x128xf32>
    tpu.vector_store %arg4[%c0_5, %c0_6, %c0_7], %5 {strides = array<i32>} : memref<2x2x128xf32, #tpu.memory_space<vmem>>, vector<2x2x128xf32>,
    return
  }
  func.func @transform_0(%arg0: i32, %arg1: i32) -> (i32, i32, i32) {
    %c0_i32 = arith.constant 0 : i32
    %c0_i32_0 = arith.constant 0 : i32
    return %arg1, %arg0, %c0_i32 : i32, i32, i32
  }
  func.func @transform_1(%arg0: i32, %arg1: i32) -> (i32, i32, i32) {
    %c0_i32 = arith.constant 0 : i32
    %c0_i32_0 = arith.constant 0 : i32
    %c0_i32_1 = arith.constant 0 : i32
    return %c0_i32, %arg0, %c0_i32_0 : i32, i32, i32
  }
  func.func @transform_2(%arg0: i32, %arg1: i32) -> (i32, i32, i32) {
    %c0_i32 = arith.constant 0 : i32
    %c0_i32_0 = arith.constant 0 : i32
    return %arg1, %arg0, %c0_i32 : i32, i32, i32
  }
}

</mosaic_0001>

<llo_original>
// kernel: tpu_custom_call.1
$region0: #{tpu_custom_call.1}
  #allocation0 [shape = 'u32[]', space=smem, size = 0x4, offset = 0x4, fixed_abs, tag = 'smem constant byte address 0x4 - core index']
  #allocation1 [shape = 'u32[72,128]{1,0:T(1,128)}', space=vmem, size = 0x9000, scoped, tag = 'internal scratch']
  %s0 = inlined_call_operand.hbm [shape: f32[2,2,128], index: 0, kind: input, shape index: {}]
  %s1 = inlined_call_operand.hbm [shape: f32[1,2,128], index: 1, kind: input, shape index: {}]
  %s2 = inlined_call_operand.hbm [shape: f32[2,2,128], index: 2, kind: output, shape index: {}]
  %s3 = sld [smem:[#allocation0]]
  $region26: #{tpu_custom_call.1} parent=0
    _
  %s5 = ssub.s32 1, %s3
  %s6 = scalar_select 0, %s5, %s3
  $region1: #{tpu_custom_call.1} parent=0
    #allocation2 [shape = 'u8[2048]{0}', space=vmem, size = 0x800, scoped, tag = 'input window, operand 0, single buffered']
    #allocation3 [shape = 's32[1]{0}', space=sflag, size = 0x4, scoped, tag = 'scoped memory for tpu_custom_call.1']
    #allocation4 [shape = 's32[1]{0}', space=sflag, size = 0x4, scoped, tag = 'scoped memory for tpu_custom_call.1']
    #allocation5 [shape = 'u8[1024]{0}', space=vmem, size = 0x400, scoped, tag = 'input window, operand 1, single buffered']
    #allocation6 [shape = 's32[1]{0}', space=sflag, size = 0x4, scoped, tag = 'scoped memory for tpu_custom_call.1']
    #allocation7 [shape = 'u8[2048]{0}', space=vmem, size = 0x800, scoped, tag = 'output window, operand 0, single buffered']
    %7 = vsyncpa [#allocation3], 0
    %8 = vsyncpa [#allocation6], 0
    %9 = vsyncpa [#allocation4], 0
    // Predicated region
    $region2: #{tpu_custom_call.1} parent=1 // pred_check
      _
    $region3: #{tpu_custom_call.1} parent=1 // pred_check_branch
      %11 = sbr.rel (0) target = $region5
    $region4: #{tpu_custom_call.1} parent=1 // pred_region
      %13 = vsyncadd [#allocation3], 0
      %s14 = sshll.u32 %s0, 4
      %s15 = int_to_ptr.hbm [resolvable:$true] %s14
      %s16 = sshll.u32 [#allocation2], 4
      %s17 = int_to_ptr.vmem [resolvable:$true] %s16
      %22 = dma.hbm_to_vmem [thread:$0]  %s15, 64, %s17, [#allocation3], 32, 32, 2
    $region5: #{tpu_custom_call.1} parent=1 // pred_fallthru
      _
    // Predicated region
    $region6: #{tpu_custom_call.1} parent=1 // pred_check
      _
    $region7: #{tpu_custom_call.1} parent=1 // pred_check_branch
      %24 = sbr.rel (0) target = $region9
    $region8: #{tpu_custom_call.1} parent=1 // pred_region
      %26 = vsyncadd [#allocation6], 0
      %s28 = sshll.u32 %s1, 4
      %s29 = int_to_ptr.hbm [resolvable:$true] %s28
      %s30 = sshll.u32 [#allocation5], 4
      %s31 = int_to_ptr.vmem [resolvable:$true] %s30
      %33 = dma.hbm_to_vmem [thread:$0]  %s29, 32, %s31, [#allocation6]
    $region9: #{tpu_custom_call.1} parent=1 // pred_fallthru
      _
    // Predicated region
    $region10: #{tpu_custom_call.1} parent=1 // pred_check
      _
    $region11: #{tpu_custom_call.1} parent=1 // pred_check_branch
      %35 = sbr.rel (0) target = $region13
    $region12: #{tpu_custom_call.1} parent=1 // pred_region
      %37 = dma.done [#allocation3], 64
    $region13: #{tpu_custom_call.1} parent=1 // pred_fallthru
      _
    // Predicated region
    $region14: #{tpu_custom_call.1} parent=1 // pred_check
      _
    $region15: #{tpu_custom_call.1} parent=1 // pred_check_branch
      %39 = sbr.rel (0) target = $region17
    $region16: #{tpu_custom_call.1} parent=1 // pred_region
      %41 = dma.done [#allocation6], 32
    $region17: #{tpu_custom_call.1} parent=1 // pred_fallthru
      _
    %v42 = vld [vmem:[#allocation2] sm:$0x3]
    %v43 = vld [vmem:[#allocation2 + $0x2] sm:$0x3]
    %v44 = vld [vmem:[#allocation5] sm:$0x3]
    %v45 = vmul.f32 %v42, 5.656854
    %v46 = vmul.f32 %v43, 5.656854
    %v47 = vadd.f32 %v45, %v44
    %v48 = vadd.f32 %v46, %v44
    %49 = vst [vmem:[#allocation7] sm:$0x3] %v47
    %50 = vst [vmem:[#allocation7 + $0x2] sm:$0x3] %v48
    // Predicated region
    $region18: #{tpu_custom_call.1} parent=1 // pred_check
      _
    $region19: #{tpu_custom_call.1} parent=1 // pred_check_branch
      %52 = sbr.rel (0) target = $region21
    $region20: #{tpu_custom_call.1} parent=1 // pred_region
      %54 = vsyncadd [#allocation4], 0
      %s55 = sshll.u32 [#allocation7], 4
      %s56 = int_to_ptr.vmem [resolvable:$true] %s55
      %s57 = sshll.u32 %s2, 4
      %s58 = int_to_ptr.hbm [resolvable:$true] %s57
      %63 = dma.vmem_to_hbm [thread:$0]  %s56, 64, %s58, [#allocation4], 32, 32, 2
    $region21: #{tpu_custom_call.1} parent=1 // pred_fallthru
      _
    // Predicated region
    $region22: #{tpu_custom_call.1} parent=1 // pred_check
      _
    $region23: #{tpu_custom_call.1} parent=1 // pred_check_branch
      %65 = sbr.rel (0) target = $region25
    $region24: #{tpu_custom_call.1} parent=1 // pred_region
      %67 = dma.done [#allocation4], 64
    $region25: #{tpu_custom_call.1} parent=1 // pred_fallthru
      _
    %68 = vsyncpa [#allocation3], 1
    %69 = vsyncpa [#allocation6], 1
    %70 = vsyncpa [#allocation4], 1

</llo_original>
